<compile_context>
chip_gen: v5e
topology: v5e:2x2
jax: 0.10.0
libtpu: 0.0.40
codegen_flags: <defaults>
</compile_context>

<pallas_src>
import functools

import jax
import jax.numpy as jnp
from jax.experimental import pallas as pl
from jax.experimental.pallas import tpu as pltpu


def _round_up(x, m):
    return (x + m - 1) // m * m


def _vmem_budget_and_limit():
    """Generation-aware VMEM numbers (v5e/v6e: 128 MiB physical, v7x: 64 MiB)."""
    try:
        cap = int(pltpu.get_tpu_info().vmem_capacity_bytes)
    except Exception:
        cap = 64 * 1024 * 1024  # conservative (v7x-sized) fallback
    budget = int(0.45 * cap)                              # tile-chooser target
    limit = min(int(0.70 * cap), 100 * 1024 * 1024)       # requested scoped limit
    return budget, limit


def _choose_block_m(m, k, e_out, in_bytes, out_bytes, budget_bytes,
                    max_block=1024, min_grid_steps=4):
    """Row tile: multiple of 8, working set under the VMEM budget, and at least
    `min_grid_steps` grid steps when M allows (dual-TC sharding + pipelining)."""
    if m <= 8:
        return m
    tm = max_block
    while tm > 8:
        need = (2 * tm * k * in_bytes          # double-buffered patch tile
                + 1 * k * e_out * in_bytes     # single-buffered resident weight
                + 2 * tm * e_out * out_bytes)  # double-buffered output tile
        if need <= budget_bytes:
            break
        tm //= 2
    tm = max(tm, 8)
    # Cap so there are >= min_grid_steps grid steps (v7x: both TensorCores busy,
    # prologue DMA overlapped).  Cost per extra step is only ~0.35 us.
    tm = min(tm, max(8, _round_up(-(-m // min_grid_steps), 8)))
    tm = min(tm, _round_up(m, 8))
    # Prefer a tile that divides M (no partial last tile) if one is nearby.
    if m % tm != 0:
        for cand in range(tm, max(8, tm // 2) - 1, -8):
            if m % cand == 0:
                tm = cand
                break
    return tm


def _patch_embed_kernel(x_ref, w_ref, b_ref, o_ref):
    # x_ref: (TM, K) patch rows; w_ref: (K, E_out) VMEM-resident weight;
    # b_ref: (1, E_out) f32 bias; o_ref: (TM, E_out) output (bf16 by default).
    acc = jnp.dot(x_ref[...], w_ref[...], preferred_element_type=jnp.float32)
    o_ref[...] = (acc + b_ref[...]).astype(o_ref.dtype)


def prepare_patch_embed_params(weight, bias, *, compute_dtype=jnp.bfloat16,
                               pad_output_lanes=None):
    """Conv2d weight (E,C,P,P) / bias (E,) -> (K, E_out) / (1, E_out).

    Do this once per model (cache the result) instead of per forward call.
    E_out is E rounded up to 128 lanes only when padding waste is <= 25%; for
    small E the unpadded (masked-store) path writes far fewer HBM bytes.
    """
    E = weight.shape[0]
    K = weight.shape[1] * weight.shape[2] * weight.shape[3]
    e_pad = _round_up(E, 128)
    if pad_output_lanes is None:
        pad_output_lanes = (e_pad - E) * 4 <= e_pad
    e_out = e_pad if pad_output_lanes else E
    w_mat = weight.reshape(E, K).T.astype(compute_dtype)
    b_mat = bias.reshape(1, E).astype(jnp.float32)
    if e_out != E:
        w_mat = jnp.pad(w_mat, ((0, 0), (0, e_out - E)))
        b_mat = jnp.pad(b_mat, ((0, 0), (0, e_out - E)))
    return w_mat, b_mat


def patch_embed_prepared(x, w_mat, b_mat, patch_size, embed_dim, *,
                         out_dtype=jnp.bfloat16, block_m=None):
    """x: (B, C, H, W) NCHW; prepared (K, E_out) weight; -> (B, N, embed_dim)."""
    B, C, H, W = x.shape
    P = patch_size
    assert H % P == 0 and W % P == 0
    Gh, Gw = H // P, W // P
    N = Gh * Gw
    K = C * P * P
    M = B * N
    E = embed_dim
    K_w, E_out = w_mat.shape
    assert K_w == K, (K_w, K)
    compute_dtype = w_mat.dtype

    # Patch extraction is a pure layout op.  Cast to the compute dtype FIRST so
    # that if XLA materializes this intermediate (fusion into the Pallas input
    # DMA is requested via allow_input_fusion but not guaranteed) the extra
    # HBM round trip is in the narrow dtype.
    patches = x.astype(compute_dtype).reshape(B, C, Gh, P, Gw, P)
    patches = patches.transpose(0, 2, 4, 1, 3, 5).reshape(M, K)

    in_bytes = jnp.dtype(compute_dtype).itemsize
    out_bytes = jnp.dtype(out_dtype).itemsize
    budget, vmem_limit = _vmem_budget_and_limit()
    if block_m is None:
        tm = _choose_block_m(M, K, E_out, in_bytes, out_bytes, budget)
    else:
        tm = min(M, _round_up(int(block_m), 8))   # sublane-safe user override
    grid_m = pl.cdiv(M, tm)

    cost = pl.CostEstimate(
        flops=2 * M * K * E_out,
        transcendentals=0,
        bytes_accessed=(M * K * in_bytes + K * E_out * in_bytes
                        + E_out * 4 + M * E_out * out_bytes),
    )

    out = pl.pallas_call(
        _patch_embed_kernel,
        out_shape=jax.ShapeDtypeStruct((M, E_out), out_dtype),
        grid=(grid_m,),
        in_specs=[
            # Patch rows streamed over M (double-buffered by the pipeline).
            pl.BlockSpec((tm, K), lambda i: (i, 0)),
            # Weight & bias: whole-array VMEM residents, DMA'd once, 1 buffer.
            pl.BlockSpec(memory_space=pltpu.MemorySpace.VMEM),
            pl.BlockSpec(memory_space=pltpu.MemorySpace.VMEM),
        ],
        out_specs=pl.BlockSpec((tm, E_out), lambda i: (i, 0)),
        compiler_params=pltpu.CompilerParams(
            # Independent M tiles: shard across both TensorCores on v7x.
            dimension_semantics=("parallel",),
            vmem_limit_bytes=vmem_limit,
            # Ask XLA to fold the patch reshape/transpose/cast into the input DMA.
            allow_input_fusion=[True, False, False],
        ),
        cost_estimate=cost,
    )(patches, w_mat, b_mat)

    if E_out != E:
        out = out[:, :E]   # only taken when lane padding was chosen
    return out.reshape(B, N, E)


def patch_embed(x, weight, bias, patch_size, *, compute_dtype=jnp.bfloat16,
                out_dtype=jnp.bfloat16, block_m=None, pad_output_lanes=None):
    """Convenience wrapper: raw Conv2d params -> (B, N, E).

    NOTE: default compute/out dtype is bfloat16 (f32 accumulation on the MXU);
    pass float32 for a bit-faithful match to the PyTorch f32 conv.
    """
    w_mat, b_mat = prepare_patch_embed_params(
        weight, bias, compute_dtype=compute_dtype,
        pad_output_lanes=pad_output_lanes)
    return patch_embed_prepared(x, w_mat, b_mat, patch_size, weight.shape[0],
                                out_dtype=out_dtype, block_m=block_m)


def reference_patch_embed(x, weight, bias, patch_size):
    """Pure-JAX reference: conv(stride=kernel=patch) -> flatten -> transpose."""
    y = jax.lax.conv_general_dilated(
        x, weight,
        window_strides=(patch_size, patch_size),
        padding="VALID",
        dimension_numbers=("NCHW", "OIHW", "NCHW"),
        precision=jax.lax.Precision.HIGHEST,
    ) + bias[None, :, None, None]
    B, E, Gh, Gw = y.shape
    return y.reshape(B, E, Gh * Gw).transpose(0, 2, 1)


def _check(out, ref, atol, rtol, what):
    assert out.shape == ref.shape, (what, out.shape, ref.shape)
    assert jnp.allclose(out, ref, atol=atol, rtol=rtol), \
        f"mismatch vs reference: {what}"


if __name__ == "__main__":
    key = jax.random.PRNGKey(0)
    kx, kw, kb, kx2, kw2, kb2 = jax.random.split(key, 6)

    # Small shapes consistent with the module: img_size=16, patch_size=4,
    # in_c=4, embed_dim=32, batch=2 -> num_patches=16, M=32, K=64.
    B, C, H, W = 2, 4, 16, 16
    P, E = 4, 32
    x = jax.random.normal(kx, (B, C, H, W), dtype=jnp.float32)
    weight = jax.random.normal(kw, (E, C, P, P), dtype=jnp.float32) * 0.02
    bias = jax.random.normal(kb, (E,), dtype=jnp.float32) * 0.02
    ref = reference_patch_embed(x, weight, bias, P)

    # 1) f32 path (f32 MXU operands + f32 output); tolerance allows for
    #    possible bf16-pass MXU emulation differences on either side.
    f32_fn = jax.jit(functools.partial(patch_embed, patch_size=P,
                                       compute_dtype=jnp.float32,
                                       out_dtype=jnp.float32))
    out_f32 = jax.block_until_ready(f32_fn(x, weight, bias))
    _check(out_f32, ref, 5e-3, 1e-3, "f32")

    # 2) Default optimized path: bf16 operands + bf16 output, f32 accumulation.
    #    The default chooser gives tm=8 -> 4 pipelined, parallel grid steps.
    bf16_fn = jax.jit(functools.partial(patch_embed, patch_size=P))
    out_bf16 = jax.block_until_ready(bf16_fn(x, weight, bias))
    _check(out_bf16, ref, 2e-2, 2e-2, "bf16 default")

    # 3) User block_m not a multiple of 8 is rounded up (12 -> 16, grid=2).
    blk_fn = jax.jit(functools.partial(patch_embed, patch_size=P,
                                       compute_dtype=jnp.float32,
                                       out_dtype=jnp.float32, block_m=12))
    out_blk = jax.block_until_ready(blk_fn(x, weight, bias))
    _check(out_blk, ref, 5e-3, 1e-3, "f32 block_m=12")

    # 4) Second config (K=768, E=256): output already lane-dense, no pad/slice.
    B2, C2, H2, W2, P2, E2 = 2, 3, 64, 64, 16, 256
    x2 = jax.random.normal(kx2, (B2, C2, H2, W2), dtype=jnp.float32)
    w2 = jax.random.normal(kw2, (E2, C2, P2, P2), dtype=jnp.float32) * 0.02
    b2 = jax.random.normal(kb2, (E2,), dtype=jnp.float32) * 0.02
    ref2 = reference_patch_embed(x2, w2, b2, P2)
    fn2 = jax.jit(functools.partial(patch_embed, patch_size=P2))
    out2 = jax.block_until_ready(fn2(x2, w2, b2))
    _check(out2, ref2, 2e-2, 2e-2, "bf16 K=768 E=256")

    print("KERNEL_OK")
</pallas_src>

<mosaic_0001>
module attributes {stable_mosaic.version = 11 : i64} {
  func.func @_patch_embed_kernel(%arg0: i32, %arg1: memref<8x64xf32, #tpu.memory_space<vmem>>, %arg2: memref<64x32xf32, #tpu.memory_space<vmem>>, %arg3: memref<1x32xf32, #tpu.memory_space<vmem>>, %arg4: memref<8x32xf32, #tpu.memory_space<vmem>>) attributes {dimension_semantics = [#tpu.dimension_semantics<parallel>], iteration_bounds = array<i64: 4>, scalar_prefetch = 0 : i64, scratch_operands = 0 : i64, tpu.core_type = #tpu.core_type<tc>, window_params = [{transform_indices = @transform_0, window_bounds = array<i64: 8, 64>}, {pipeline_mode = #tpu.pipeline_mode<synchronous>, transform_indices = @transform_1, window_bounds = array<i64: 64, 32>}, {pipeline_mode = #tpu.pipeline_mode<synchronous>, transform_indices = @transform_2, window_bounds = array<i64: 1, 32>}, {transform_indices = @transform_3, window_bounds = array<i64: 8, 32>}]} {
    %c0 = arith.constant 0 : index
    %c0_0 = arith.constant 0 : index
    %0 = vector.load %arg1[%c0, %c0_0] : memref<8x64xf32, #tpu.memory_space<vmem>>, vector<8x64xf32>
    %c0_1 = arith.constant 0 : index
    %c0_2 = arith.constant 0 : index
    %1 = vector.load %arg2[%c0_1, %c0_2] : memref<64x32xf32, #tpu.memory_space<vmem>>, vector<64x32xf32>
    %cst = arith.constant dense<0.000000e+00> : vector<8x32xf32>
    %2 = tpu.matmul %0, %1, %cst {dimension_numbers = #tpu.dot_dimension_numbers<[1], [0], [0], [1], [0, 0, 1, 1], [], []>} : vector<8x64xf32>, vector<64x32xf32>, vector<8x32xf32> -> vector<8x32xf32>
    %c0_3 = arith.constant 0 : index
    %c0_4 = arith.constant 0 : index
    %3 = vector.load %arg3[%c0_3, %c0_4] : memref<1x32xf32, #tpu.memory_space<vmem>>, vector<1x32xf32>
    %4 = vector.broadcast %3 : vector<1x32xf32> to vector<8x32xf32>
    %5 = arith.addf %2, %4 : vector<8x32xf32>
    %c0_5 = arith.constant 0 : index
    %c0_6 = arith.constant 0 : index
    %6 = vector.load %arg4[%c0_5, %c0_6] : memref<8x32xf32, #tpu.memory_space<vmem>>, vector<8x32xf32>
    tpu.vector_store %arg4[%c0_5, %c0_6], %5 {strides = array<i32>} : memref<8x32xf32, #tpu.memory_space<vmem>>, vector<8x32xf32>,
    return
  }
  func.func @transform_0(%arg0: i32) -> (i32, i32) {
    %c0_i32 = arith.constant 0 : i32
    %c0_i32_0 = arith.constant 0 : i32
    return %arg0, %c0_i32 : i32, i32
  }
  func.func @transform_1(%arg0: i32) -> (i32, i32) {
    %c0_i32 = arith.constant 0 : i32
    %c0_i32_0 = arith.constant 0 : i32
    %c0_i32_1 = arith.constant 0 : i32
    return %c0_i32, %c0_i32_0 : i32, i32
  }
  func.func @transform_2(%arg0: i32) -> (i32, i32) {
    %c0_i32 = arith.constant 0 : i32
    %c0_i32_0 = arith.constant 0 : i32
    %c0_i32_1 = arith.constant 0 : i32
    return %c0_i32, %c0_i32_0 : i32, i32
  }
  func.func @transform_3(%arg0: i32) -> (i32, i32) {
    %c0_i32 = arith.constant 0 : i32
    %c0_i32_0 = arith.constant 0 : i32
    return %arg0, %c0_i32 : i32, i32
  }
}

</mosaic_0001>

<llo_original>
// kernel: patch_embed.1
$region0: #{patch_embed.1}
  #allocation0 [shape = 'u32[]', space=smem, size = 0x4, offset = 0x4, fixed_abs, tag = 'smem constant byte address 0x4 - core index']
  #allocation1 [shape = 'u32[72,128]{1,0:T(1,128)}', space=vmem, size = 0x9000, scoped, tag = 'internal scratch']
  %s0 = inlined_call_operand.vmem [shape: f32[32,64], index: 0, kind: input, shape index: {}]
  %s1 = inlined_call_operand.vmem [shape: f32[64,32], index: 1, kind: input, shape index: {}]
  %s2 = inlined_call_operand.vmem [shape: f32[1,32], index: 2, kind: input, shape index: {}]
  %s3 = inlined_call_operand.hbm [shape: f32[32,32], index: 3, kind: output, shape index: {}]
  %s4 = sld [smem:[#allocation0]]
  $region45: #{patch_embed.1} parent=0
    _
  %s6 = ssub.s32 1, %s4
  %s7 = scalar_select 0, %s6, %s4
  $region1: #{patch_embed.1} parent=0
    #allocation2 [shape = 'u8[8192]{0}', space=vmem, size = 0x2000, scoped, tag = 'output window, operand 0']
    #allocation3 [shape = 's32[2]{0}', space=sflag, size = 0x8, scoped, tag = 'scoped memory for patch_embed.1']
    %8 = vsyncpa [#allocation3], 0
    %s9 = scalar_lea.sflag [#allocation3], 1
    %10 = vsyncpa %s9, 0
    loop: start=0, step=1, limit=6
    $region2: #{patch_embed.1} parent=1 // loop_pre_header
      _
    $region3: #{patch_embed.1} parent=1 // loop_header
      %s12 = sphi 0, %s16
      %p13 = scmp.ge.s32.totalorder %s12, 6
      %s22 = sphi 0, %s24
      %s25 = sphi 0, %s22
      %s26 = sphi 0, %s25
      %s42 = sphi 0, %s26
      %s46 = sphi 0, %s46
      %s48 = sphi 0, %s46
      %s49 = sphi 0, %s48
      %s63 = sphi 0, %s49
      %s67 = sphi 0, %s67
      %s69 = sphi 0, %s67
      %s70 = sphi 0, %s69
      %s84 = sphi 0, %s70
      %s90 = sphi 0, %s92
      %s93 = sphi 0, %s90
      %s94 = sphi 0, %s93
      %s110 = sphi 0, %s94
    $region4: #{patch_embed.1} parent=1 // loop_header_branch
      %15 = sbr.rel (%p13) target = $region8
    $region5: #{patch_embed.1} parent=1 // loop_body
      %s17 = ssub.s32 %s12, 1
      %s18 = ssub.s32 %s12, 2
      %s19 = sadd.s32 %s12, 1
      %s20 = ssub.s32 %s12, %s19
      %p21 = scmp.eq.s32.totalorder %s20, 0
      %s23 = sadd.s32 %s22, 1
      %s24 = scalar_select %p21, %s22, %s23
      %p27 = pneg %p21
      %p28 = scmp.eq.s32.totalorder %s12, 3
      %p29 = por %p27, %p28
      %p30 = scmp.ne.s32.totalorder %s22, %s25
      %p31 = scmp.eq.s32.totalorder %s12, 0
      %p32 = por %p30, %p31
      %p33 = scmp.ne.s32.totalorder %s22, %s25
      %p34 = scmp.eq.s32.totalorder %s17, 3
      %p35 = por %p33, %p34
      %p36 = scmp.ne.s32.totalorder %s25, %s26
      %p37 = scmp.eq.s32.totalorder %s17, 0
      %p38 = por %p36, %p37
      %p39 = scmp.ne.s32.totalorder %s25, %s26
      %p40 = scmp.eq.s32.totalorder %s18, 3
      %p41 = por %p39, %p40
      %p43 = scmp.ne.s32.totalorder %s26, %s42
      %p44 = scmp.eq.s32.totalorder %s18, 0
      %p45 = por %p43, %p44
      %s47 = sadd.s32 %s46, 1
      %p50 = scmp.eq.s32.totalorder %s12, 3
      %p51 = scmp.ne.s32.totalorder %s46, %s48
      %p52 = scmp.eq.s32.totalorder %s12, 0
      %p53 = por %p51, %p52
      %p54 = scmp.ne.s32.totalorder %s46, %s48
      %p55 = scmp.eq.s32.totalorder %s17, 3
      %p56 = por %p54, %p55
      %p57 = scmp.ne.s32.totalorder %s48, %s49
      %p58 = scmp.eq.s32.totalorder %s17, 0
      %p59 = por %p57, %p58
      %p60 = scmp.ne.s32.totalorder %s48, %s49
      %p61 = scmp.eq.s32.totalorder %s18, 3
      %p62 = por %p60, %p61
      %p64 = scmp.ne.s32.totalorder %s49, %s63
      %p65 = scmp.eq.s32.totalorder %s18, 0
      %p66 = por %p64, %p65
      %s68 = sadd.s32 %s67, 1
      %p71 = scmp.eq.s32.totalorder %s12, 3
      %p72 = scmp.ne.s32.totalorder %s67, %s69
      %p73 = scmp.eq.s32.totalorder %s12, 0
      %p74 = por %p72, %p73
      %p75 = scmp.ne.s32.totalorder %s67, %s69
      %p76 = scmp.eq.s32.totalorder %s17, 3
      %p77 = por %p75, %p76
      %p78 = scmp.ne.s32.totalorder %s69, %s70
      %p79 = scmp.eq.s32.totalorder %s17, 0
      %p80 = por %p78, %p79
      %p81 = scmp.ne.s32.totalorder %s69, %s70
      %p82 = scmp.eq.s32.totalorder %s18, 3
      %p83 = por %p81, %p82
      %p85 = scmp.ne.s32.totalorder %s70, %s84
      %p86 = scmp.eq.s32.totalorder %s18, 0
      %p87 = por %p85, %p86
      %s88 = ssub.s32 %s12, %s19
      %p89 = scmp.eq.s32.totalorder %s88, 0
      %s91 = sadd.s32 %s90, 1
      %s92 = scalar_select %p89, %s90, %s91
      %p95 = pneg %p89
      %p96 = scmp.eq.s32.totalorder %s12, 3
      %p97 = por %p95, %p96
      %p98 = scmp.ne.s32.totalorder %s90, %s93
      %p99 = scmp.eq.s32.totalorder %s12, 0
      %p100 = por %p98, %p99
      %p101 = scmp.ne.s32.totalorder %s90, %s93
      %p102 = scmp.eq.s32.totalorder %s17, 3
      %p103 = por %p101, %p102
      %p104 = scmp.ne.s32.totalorder %s93, %s94
      %p105 = scmp.eq.s32.totalorder %s17, 0
      %p106 = por %p104, %p105
      %p107 = scmp.ne.s32.totalorder %s93, %s94
      %p108 = scmp.eq.s32.totalorder %s18, 3
      %p109 = por %p107, %p108
      %p111 = scmp.ne.s32.totalorder %s94, %s110
      %p112 = scmp.eq.s32.totalorder %s18, 0
      %p113 = por %p111, %p112
      %p114 = scmp.le.s32.totalorder 1, %s12
      %p115 = scmp.lt.s32.totalorder %s12, 5
      %p116 = pnand %p114, %p115
      %p117 = pneg %p116
      // Predicated region
      $region9: #{patch_embed.1} parent=5 // pred_check
        _
      $region10: #{patch_embed.1} parent=5 // pred_check_branch
        %119 = sbr.rel (%p116) target = $region12
      $region11: #{patch_embed.1} parent=5 // pred_region
        %s120 = ssub.s32 %s12, 1
        // Predicated region
        $region13: #{patch_embed.1} parent=11 // pred_check
          %p121 = pneg %p59
        $region14: #{patch_embed.1} parent=11 // pred_check_branch
          %123 = sbr.rel (%p121) target = $region16
        $region15: #{patch_embed.1} parent=11 // pred_region
          _
        $region16: #{patch_embed.1} parent=11 // pred_fallthru
          _
        // Predicated region
        $region17: #{patch_embed.1} parent=11 // pred_check
          %p124 = pneg %p80
        $region18: #{patch_embed.1} parent=11 // pred_check_branch
          %126 = sbr.rel (%p124) target = $region20
        $region19: #{patch_embed.1} parent=11 // pred_region
          _
        $region20: #{patch_embed.1} parent=11 // pred_fallthru
          _
      $region12: #{patch_embed.1} parent=5 // pred_fallthru
        _
      %p127 = scmp.lt.s32.totalorder %s12, 4
      // Predicated region
      $region21: #{patch_embed.1} parent=5 // pred_check
        %p128 = pneg %p127
      $region22: #{patch_embed.1} parent=5 // pred_check_branch
        %130 = sbr.rel (%p128) target = $region24
      $region23: #{patch_embed.1} parent=5 // pred_region
        // Predicated region
        $region25: #{patch_embed.1} parent=23 // pred_check
          %p131 = pneg %p32
        $region26: #{patch_embed.1} parent=23 // pred_check_branch
          %133 = sbr.rel (%p131) target = $region28
        $region27: #{patch_embed.1} parent=23 // pred_region
          %p134 = scmp.lt.s32.totalorder %s12, 3
          %s135 = scalar_select %p134, %s12, 3
          %s136 = smul.addr %s135, 8
          %s137 = scalar_lea.vmem %s0, %s136
        $region28: #{patch_embed.1} parent=23 // pred_fallthru
          _
      $region24: #{patch_embed.1} parent=5 // pred_fallthru
        _
      %p138 = scmp.le.s32.totalorder 1, %s12
      %p139 = scmp.lt.s32.totalorder %s12, 5
      %p140 = pnand %p138, %p139
      %p141 = pneg %p140
      // Predicated region
      $region29: #{patch_embed.1} parent=5 // pred_check
        _
      $region30: #{patch_embed.1} parent=5 // pred_check_branch
        %143 = sbr.rel (%p140) target = $region32
      $region31: #{patch_embed.1} parent=5 // pred_region
        %s144 = ssub.s32 %s12, 1
        %p145 = scmp.lt.s32.totalorder %s17, 3
        %s146 = scalar_select %p145, %s17, 3
        %s147 = smul.addr %s146, 8
        %s148 = scalar_lea.vmem %s0, %s147
        %p149 = pneg %p38
        %p150 = pneg %p35
        %p151 = pneg %p59
        %p152 = pneg %p56
        %p153 = pneg %p80
        %p154 = pneg %p77
        %p155 = pneg %p106
        %p156 = pneg %p103
        %s157 = sand.u32 %s93, 1
        %s158 = scalar_lea.sflag [#allocation3], %s157
        %s159 = sand.u32 %s93, 1
        %s160 = smul.addr %s159, 8
        %s161 = scalar_lea.vmem [#allocation2], %s160
        %p162 = scmp.lt.s32.totalorder %s17, 3
        %s163 = scalar_select %p162, %s17, 3
        %s164 = smul.addr %s163, 8
        %s165 = scalar_lea.vmem %s0, %s164
        %v166 = vld [vmem:[%s165] sm:$0xff]
        %v167 = vld [vmem:[%s1] sm:$0xff]
        %v168 = vld [vmem:[%s1 + $0x8] sm:$0xff]
        %v169 = vld [vmem:[%s1 + $0x10] sm:$0xff]
        %v170 = vld [vmem:[%s1 + $0x18] sm:$0xff]
        %v171 = vld [vmem:[%s1 + $0x20] sm:$0xff]
        %v172 = vld [vmem:[%s1 + $0x28] sm:$0xff]
        %v173 = vld [vmem:[%s1 + $0x30] sm:$0xff]
        %v174 = vld [vmem:[%s1 + $0x38] sm:$0xff]
        %v175 = vld [vmem:[%s2] sm:$0x1]
        %v177 = vperm.slane %v175, 0
        %vm179 = vcmask 523264
        %v181 = vsel %vm179, %v166, 0
        %183 = vmatpush.msra.mxu0 0.0
        %184 = vmatpush.msra.mxu0 0.0
        %185 = vmatpush.msra.mxu0 0.0
        %186 = vmatpush.msra.mxu0 0.0
        %187 = vmatpush.msra.mxu0 0.0
        %188 = vmatpush.msra.mxu0 0.0
        %189 = vmatpush.msra.mxu0 0.0
        %190 = vmatpush.msra.mxu0 0.0
        %191 = vmatpush.msra.mxu0 %v174
        %192 = vmatpush.msra.mxu0 %v173
        %193 = vmatpush.msra.mxu0 %v172
        %194 = vmatpush.msra.mxu0 %v171
        %195 = vmatpush.msra.mxu0 %v170
        %196 = vmatpush.msra.mxu0 %v169
        %197 = vmatpush.msra.mxu0 %v168
        %198 = vmatpush.msra.mxu0 %v167
        %199 = vmatmul.f32.gmra.mxu0 %v181
        %v200 = vpop.f32.mrf.mxu0
        %v201 = vadd.f32 %v177, %v200
        %202 = vdwg.mxu0
        %vm203 = vcmask 261120
        %204 = vst.msk [vmem:[%s161] sm:$0xff] %vm203, %v201
        %s205 = sand.u32 %s93, 1
        %s206 = scalar_lea.sflag [#allocation3], %s205
        %s207 = sand.u32 %s93, 1
        %s208 = smul.addr %s207, 8
        %s209 = scalar_lea.vmem [#allocation2], %s208
        // Predicated region
        $region33: #{patch_embed.1} parent=31 // pred_check
          %p210 = pneg %p103
        $region34: #{patch_embed.1} parent=31 // pred_check_branch
          %212 = sbr.rel (%p210) target = $region36
        $region35: #{patch_embed.1} parent=31 // pred_region
          %214 = vsyncadd %s206, 0
          %s215 = smul.addr %s17, 8
          %s216 = scalar_lea.hbm %s3, %s215
          %s218 = sshll.u32 %s209, 4
          %s219 = int_to_ptr.vmem [resolvable:$true] %s218
          %s220 = sshll.u32 %s216, 4
          %s221 = int_to_ptr.hbm [resolvable:$true] %s220
          %223 = dma.vmem_to_hbm [thread:$0]  %s219, 128, %s221, %s206
        $region36: #{patch_embed.1} parent=31 // pred_fallthru
          _
      $region32: #{patch_embed.1} parent=5 // pred_fallthru
        _
      %p224 = scmp.le.s32.totalorder 2, %s12
      // Predicated region
      $region37: #{patch_embed.1} parent=5 // pred_check
        %p225 = pneg %p224
      $region38: #{patch_embed.1} parent=5 // pred_check_branch
        %227 = sbr.rel (%p225) target = $region40
      $region39: #{patch_embed.1} parent=5 // pred_region
        %s228 = ssub.s32 %s12, 2
        // Predicated region
        $region41: #{patch_embed.1} parent=39 // pred_check
          %p229 = pneg %p109
        $region42: #{patch_embed.1} parent=39 // pred_check_branch
          %231 = sbr.rel (%p229) target = $region44
        $region43: #{patch_embed.1} parent=39 // pred_region
          %s232 = sand.u32 %s94, 1
          %s233 = scalar_lea.sflag [#allocation3], %s232
          %s234 = sand.u32 %s94, 1
          %s235 = smul.addr %s234, 8
          %s236 = scalar_lea.vmem [#allocation2], %s235
          %238 = dma.done %s233, 128
        $region44: #{patch_embed.1} parent=39 // pred_fallthru
          _
      $region40: #{patch_embed.1} parent=5 // pred_fallthru
        _
    $region6: #{patch_embed.1} parent=1 // loop_footer
      %s16 = sadd.s32 1, %s12
    $region7: #{patch_embed.1} parent=1 // loop_footer_branch
      %11 = sbr.rel target = $region3
    $region8: #{patch_embed.1} parent=1 // loop_exit
      _
    %239 = vsyncpa [#allocation3], 1
    %s240 = scalar_lea.sflag [#allocation3], 1
    %241 = vsyncpa %s240, 1

</llo_original>
